<compile_context>
chip_gen: v7x
topology: tpu7x:2x2x1
jax: 0.10.0
libtpu: 0.0.40
codegen_flags: <defaults>
</compile_context>

<pallas_src>
import functools
import math

import jax
import jax.numpy as jnp
from jax.experimental import pallas as pl
from jax.experimental.pallas import tpu as pltpu

LN_EPS = 1e-5  # nn.LayerNorm default


def _patch_merging_kernel(x_ref, wt_ref, wb_ref, bias_ref, o_ref):
    """Fused 2x2 gather + LayerNorm(4C) + Linear(4C -> 2C, no bias).

    x_ref   : (TR, 2, Wh, 2C)  TR merged rows; axis 1 = H parity; the last axis
                               packs the two W parities' C channels.
    wt_ref  : (2C, 2C)         gamma-folded W^T rows for the [x0 | x2] half
    wb_ref  : (2C, 2C)         gamma-folded W^T rows for the [x1 | x3] half
    bias_ref: (1, 2C)  f32     beta @ W^T (LayerNorm beta folded through W)
    o_ref   : (TR*Wh, 2C)
    """
    xt = x_ref[...]                                   # (TR, 2, Wh, 2C)
    tr, _, wh, c2 = xt.shape

    # In-kernel 2x2 merge: the two H-parity halves of the 4C feature vector.
    # top = [x0 | x2], bot = [x1 | x3]; no lane-concat is ever materialized.
    top = xt[:, 0].reshape(tr * wh, c2).astype(jnp.float32)
    bot = xt[:, 1].reshape(tr * wh, c2).astype(jnp.float32)

    # LayerNorm statistics over the full 4C axis from the two halves (f32).
    inv_c4 = 1.0 / (2 * c2)
    mean = (jnp.sum(top, axis=-1, keepdims=True)
            + jnp.sum(bot, axis=-1, keepdims=True)) * inv_c4
    ct = top - mean
    cb = bot - mean
    var = (jnp.sum(ct * ct, axis=-1, keepdims=True)
           + jnp.sum(cb * cb, axis=-1, keepdims=True)) * inv_c4
    rstd = jax.lax.rsqrt(var + LN_EPS)                # (tokens, 1), EUP

    # gamma is folded into the weights; rstd (per-token scalar) and the folded
    # beta-bias are applied on the 4x narrower (tokens, 2C) matmul result.
    mm_dt = wt_ref.dtype
    y = jnp.dot(ct.astype(mm_dt), wt_ref[...], preferred_element_type=jnp.float32)
    y = y + jnp.dot(cb.astype(mm_dt), wb_ref[...], preferred_element_type=jnp.float32)
    o_ref[...] = (rstd * y + bias_ref[...]).astype(o_ref.dtype)


# --------------------------- tiling / VMEM sizing ---------------------------

def _sublane(itemsize):
    return {4: 8, 2: 16, 1: 32}.get(int(itemsize), 8)


def _pad_up(n, m):
    return -(-int(n) // int(m)) * int(m)


def _footprint_bytes(tr, wh, c2, in_isz, w_isz, out_isz):
    """Conservative padded-VMEM footprint of one pipelined grid step."""
    c2_lane = _pad_up(c2, 128)
    tokens = tr * wh
    in_blk = 2 * tr * 2 * _pad_up(wh, _sublane(in_isz)) * c2_lane * in_isz   # 2x buffered
    out_blk = 2 * _pad_up(tokens, _sublane(out_isz)) * c2_lane * out_isz     # 2x buffered
    # Count the weight halves double-buffered even though they are requested
    # single-buffered (pl.Buffered(1)) -- conservative if the hint is ignored.
    w_blk = 2 * 2 * _pad_up(c2, _sublane(w_isz)) * c2_lane * w_isz
    tmp = 6 * _pad_up(tokens, 8) * c2_lane * 4        # f32 LN temporaries / headroom
    return in_blk + out_blk + w_blk + tmp + (2 << 20)


def _pick_row_tile(r, wh, c2, in_isz, out_isz, w_isz, target_in_bytes, vmem_budget):
    """Rows (of Wh tokens each) per grid step, sized by bytes not token count."""
    sub_out = _sublane(out_isz)
    g = sub_out // math.gcd(wh, sub_out)   # smallest tr with (tr*wh) % sub_out == 0
    row_bytes = 2 * _pad_up(wh, _sublane(in_isz)) * _pad_up(c2, 128) * in_isz

    tr = max(1, int(target_in_bytes) // int(row_bytes))
    tr = max(g, (tr // g) * g)
    # Back off until the padded footprint fits the VMEM budget (v7x: 64 MiB
    # physical per TensorCore -- never claim all of it).
    while tr > g and _footprint_bytes(tr, wh, c2, in_isz, w_isz, out_isz) > vmem_budget:
        tr = max(g, ((tr // 2) // g) * g)

    if tr >= r:
        if r >= 2 * g:
            # Split into >=2 aligned steps so both v7x TensorCores get work.
            tr = (((r + 1) // 2) + g - 1) // g * g
        else:
            tr = r           # single full-extent block (always layout-legal)
    else:
        steps = -(-r // tr)
        if steps % 2 == 1:
            # Prefer an even step count for the 2-TC "parallel" grid axis.
            cand = ((-(-r // (steps + 1))) + g - 1) // g * g
            if cand >= g:
                tr = cand
    return tr


def _resident_spec(block_shape):
    """BlockSpec for a grid-invariant operand; single-buffered when supported."""
    index_map = lambda *_: (0,) * len(block_shape)
    try:
        return pl.BlockSpec(block_shape, index_map, pipeline_mode=pl.Buffered(1))
    except Exception:   # older/newer BlockSpec signature -> default double buffer
        return pl.BlockSpec(block_shape, index_map)


# --------------------------------- wrapper ----------------------------------

@functools.partial(jax.jit, static_argnames=("target_block_bytes", "compute_dtype"))
def patch_merging_forward(x, gamma, beta, w_reduction, *,
                          target_block_bytes=4 << 20, compute_dtype=None):
    """Equivalent of PatchMerging.forward.

    x           : (B, H, W, C)
    gamma, beta : (4C,)      LayerNorm affine params
    w_reduction : (2C, 4C)   nn.Linear weight (PyTorch out x in layout)
    returns     : (B, H//2, W//2, 2C)
    """
    b, h, w, c = x.shape
    assert h % 2 == 0 and w % 2 == 0, "PatchMerging needs even H and W"
    c2, c4 = 2 * c, 4 * c
    hh, wh = h // 2, w // 2
    r = b * hh                   # merged "rows"; each row carries wh tokens
    n = r * wh                   # total merged tokens

    # Free reshape only -- the 2x2 gather happens inside the kernel; no merged
    # (N, 4C) slab is ever materialized in HBM.
    xr = x.reshape(r, 2, wh, c2)

    # Matmul dtype: bf16 fast path for bf16 inputs; for f32 inputs default to
    # bf16 only at large C (where the f32 MXU path becomes the wall on v5e);
    # override via compute_dtype=jnp.float32 for f32-exact behaviour.
    if compute_dtype is not None:
        mm_dtype = jnp.dtype(compute_dtype)
    elif x.dtype == jnp.float32 and c >= 256:
        mm_dtype = jnp.dtype(jnp.bfloat16)
    else:
        mm_dtype = jnp.dtype(x.dtype)

    # One-time parameter prep (tiny; constant-foldable):
    #   out = ((x-mu)*rstd*gamma + beta) @ W^T
    #       = rstd * (x-mu) @ (gamma[:,None]*W^T) + beta @ W^T
    # W^T row blocks are in Swin order [x0, x1, x2, x3]; the kernel consumes
    # the halves [x0|x2] (even H) and [x1|x3] (odd H) separately.
    wt_f32 = w_reduction.astype(jnp.float32).T                      # (4C, 2C)
    wg = (gamma.astype(jnp.float32)[:, None] * wt_f32).reshape(4, c, c2)
    w_top = jnp.concatenate([wg[0], wg[2]], axis=0).astype(mm_dtype)  # (2C, 2C)
    w_bot = jnp.concatenate([wg[1], wg[3]], axis=0).astype(mm_dtype)  # (2C, 2C)
    bias = (beta.astype(jnp.float32) @ wt_f32).reshape(1, c2)          # (1, 2C) f32

    in_isz = jnp.dtype(x.dtype).itemsize
    out_isz = in_isz
    w_isz = mm_dtype.itemsize

    vmem_budget = 48 << 20       # leave headroom under v7x's 64 MiB physical VMEM
    tr = _pick_row_tile(r, wh, c2, in_isz, out_isz, w_isz,
                        target_block_bytes, vmem_budget)
    tokens_per_tile = tr * wh
    grid = (pl.cdiv(r, tr),)     # tail block handled by Pallas OOB-write masking

    est = _footprint_bytes(tr, wh, c2, in_isz, w_isz, out_isz)
    vmem_limit = int(min(max(est, 32 << 20), vmem_budget))

    cost = pl.CostEstimate(
        flops=2 * n * c4 * c2,
        transcendentals=n,                               # one rsqrt per token
        bytes_accessed=(n * c4 * in_isz + n * c2 * out_isz
                        + c4 * c2 * w_isz + c2 * 4),
    )

    out = pl.pallas_call(
        _patch_merging_kernel,
        out_shape=jax.ShapeDtypeStruct((n, c2), x.dtype),
        grid_spec=pltpu.PrefetchScalarGridSpec(
            num_scalar_prefetch=0,
            grid=grid,
            in_specs=[
                pl.BlockSpec((tr, 2, wh, c2), lambda i: (i, 0, 0, 0)),
                _resident_spec((c2, c2)),      # gamma-folded W^T rows [x0|x2]
                _resident_spec((c2, c2)),      # gamma-folded W^T rows [x1|x3]
                _resident_spec((1, c2)),       # folded bias beta @ W^T
            ],
            out_specs=pl.BlockSpec((tokens_per_tile, c2), lambda i: (i, 0)),
        ),
        compiler_params=pltpu.CompilerParams(
            dimension_semantics=("parallel",),
            vmem_limit_bytes=vmem_limit,
        ),
        cost_estimate=cost,
    )(xr, w_top, w_bot, bias)

    return out.reshape(b, hh, wh, c2)


# ----------------------------- reference path -------------------------------

def _merge_patches(x):
    """x: (B,H,W,C) -> (B*(H//2)*(W//2), 4C) with Swin's [x0,x1,x2,x3] order."""
    b, h, w, c = x.shape
    x0 = x[:, 0::2, 0::2, :]
    x1 = x[:, 1::2, 0::2, :]
    x2 = x[:, 0::2, 1::2, :]
    x3 = x[:, 1::2, 1::2, :]
    merged = jnp.concatenate([x0, x1, x2, x3], axis=-1)
    return merged.reshape(b * (h // 2) * (w // 2), 4 * c)


def _reference_forward(x, gamma, beta, w_reduction):
    xm = _merge_patches(x).astype(jnp.float32)
    mean = jnp.mean(xm, axis=-1, keepdims=True)
    var = jnp.mean((xm - mean) ** 2, axis=-1, keepdims=True)
    xn = (xm - mean) / jnp.sqrt(var + LN_EPS)
    xn = xn * gamma.astype(jnp.float32) + beta.astype(jnp.float32)
    y = xn @ jnp.transpose(w_reduction.astype(jnp.float32))
    b, h, w, c = x.shape
    return y.reshape(b, h // 2, w // 2, 2 * c).astype(x.dtype)


if __name__ == "__main__":
    key = jax.random.PRNGKey(0)

    # --- case 1: f32, lane/sublane aligned (2C = 128, Wh = 8) ----------------
    B, H, W, C = 2, 16, 16, 64
    kx, kg, kb, kw = jax.random.split(key, 4)
    x = jax.random.normal(kx, (B, H, W, C), dtype=jnp.float32)
    gamma = 1.0 + 0.1 * jax.random.normal(kg, (4 * C,), dtype=jnp.float32)
    beta = 0.1 * jax.random.normal(kb, (4 * C,), dtype=jnp.float32)
    w_red = jax.random.normal(kw, (2 * C, 4 * C), dtype=jnp.float32) * 0.05

    out = jax.block_until_ready(patch_merging_forward(x, gamma, beta, w_red))
    ref = _reference_forward(x, gamma, beta, w_red)
    assert out.shape == (B, H // 2, W // 2, 2 * C), out.shape
    assert jnp.allclose(out, ref, atol=2e-3, rtol=2e-3), "f32 mismatch vs reference"

    # --- case 2: bf16 fast path (bf16 MXU matmul, f32 accumulation) ----------
    xb = x.astype(jnp.bfloat16)
    out_bf = jax.block_until_ready(patch_merging_forward(xb, gamma, beta, w_red))
    ref_bf = _reference_forward(xb, gamma, beta, w_red)
    assert jnp.allclose(out_bf.astype(jnp.float32), ref_bf.astype(jnp.float32),
                        atol=1e-1, rtol=1e-1), "bf16 mismatch vs reference"

    # --- case 3: non-aligned Wh=7, 2C=96 (general, non-128/8-aligned path) ---
    B2, H2, W2, C2 = 2, 14, 14, 48
    k2 = jax.random.split(key, 8)
    x2 = jax.random.normal(k2[0], (B2, H2, W2, C2), dtype=jnp.float32)
    g2 = 1.0 + 0.1 * jax.random.normal(k2[1], (4 * C2,), dtype=jnp.float32)
    b2 = 0.1 * jax.random.normal(k2[2], (4 * C2,), dtype=jnp.float32)
    w2 = jax.random.normal(k2[3], (2 * C2, 4 * C2), dtype=jnp.float32) * 0.05
    out2 = jax.block_until_ready(patch_merging_forward(x2, g2, b2, w2))
    ref2 = _reference_forward(x2, g2, b2, w2)
    assert out2.shape == (B2, H2 // 2, W2 // 2, 2 * C2), out2.shape
    assert jnp.allclose(out2, ref2, atol=2e-3, rtol=2e-3), "odd-shape mismatch vs reference"

    print("KERNEL_OK")
</pallas_src>

<mosaic_0001>
module attributes {stable_mosaic.version = 11 : i64} {
  func.func @_patch_merging_kernel(%arg0: i32, %arg1: memref<8x2x8x128xf32, #tpu.memory_space<vmem>>, %arg2: memref<128x128xf32, #tpu.memory_space<vmem>>, %arg3: memref<128x128xf32, #tpu.memory_space<vmem>>, %arg4: memref<1x128xf32, #tpu.memory_space<vmem>>, %arg5: memref<64x128xf32, #tpu.memory_space<vmem>>) attributes {dimension_semantics = [#tpu.dimension_semantics<parallel>], iteration_bounds = array<i64: 2>, scalar_prefetch = 0 : i64, scratch_operands = 0 : i64, tpu.core_type = #tpu.core_type<tc>, window_params = [{transform_indices = @transform_0, window_bounds = array<i64: 8, 2, 8, 128>}, {pipeline_mode = #tpu.pipeline_mode<synchronous>, transform_indices = @transform_1, window_bounds = array<i64: 128, 128>}, {pipeline_mode = #tpu.pipeline_mode<synchronous>, transform_indices = @transform_2, window_bounds = array<i64: 128, 128>}, {pipeline_mode = #tpu.pipeline_mode<synchronous>, transform_indices = @transform_3, window_bounds = array<i64: 1, 128>}, {transform_indices = @transform_4, window_bounds = array<i64: 64, 128>}]} {
    %c0 = arith.constant 0 : index
    %c0_0 = arith.constant 0 : index
    %c0_1 = arith.constant 0 : index
    %c0_2 = arith.constant 0 : index
    %0 = vector.load %arg1[%c0, %c0_0, %c0_1, %c0_2] : memref<8x2x8x128xf32, #tpu.memory_space<vmem>>, vector<8x2x8x128xf32>
    %1 = vector.extract_strided_slice %0 {offsets = [0, 0, 0, 0], sizes = [8, 1, 8, 128], strides = [1, 1, 1, 1]} : vector<8x2x8x128xf32> to vector<8x1x8x128xf32>
    %2 = vector.shape_cast %1 : vector<8x1x8x128xf32> to vector<8x8x128xf32>
    %3 = vector.shape_cast %2 : vector<8x8x128xf32> to vector<64x128xf32>
    %4 = vector.extract_strided_slice %0 {offsets = [0, 1, 0, 0], sizes = [8, 1, 8, 128], strides = [1, 1, 1, 1]} : vector<8x2x8x128xf32> to vector<8x1x8x128xf32>
    %5 = vector.shape_cast %4 : vector<8x1x8x128xf32> to vector<8x8x128xf32>
    %6 = vector.shape_cast %5 : vector<8x8x128xf32> to vector<64x128xf32>
    %cst = arith.constant dense<0.000000e+00> : vector<64xf32>
    %7 = vector.multi_reduction <add>, %3, %cst [1] : vector<64x128xf32> to vector<64xf32>
    %8 = vector.shape_cast %7 : vector<64xf32> to vector<64x1xf32>
    %cst_3 = arith.constant dense<0.000000e+00> : vector<64xf32>
    %9 = vector.multi_reduction <add>, %6, %cst_3 [1] : vector<64x128xf32> to vector<64xf32>
    %10 = vector.shape_cast %9 : vector<64xf32> to vector<64x1xf32>
    %11 = arith.addf %8, %10 : vector<64x1xf32>
    %cst_4 = arith.constant 3.906250e-03 : f32
    %12 = vector.broadcast %cst_4 : f32 to vector<64x1xf32>
    %13 = arith.mulf %11, %12 : vector<64x1xf32>
    %14 = vector.broadcast %13 : vector<64x1xf32> to vector<64x128xf32>
    %15 = arith.subf %3, %14 : vector<64x128xf32>
    %16 = vector.broadcast %13 : vector<64x1xf32> to vector<64x128xf32>
    %17 = arith.subf %6, %16 : vector<64x128xf32>
    %18 = arith.mulf %15, %15 : vector<64x128xf32>
    %cst_5 = arith.constant dense<0.000000e+00> : vector<64xf32>
    %19 = vector.multi_reduction <add>, %18, %cst_5 [1] : vector<64x128xf32> to vector<64xf32>
    %20 = vector.shape_cast %19 : vector<64xf32> to vector<64x1xf32>
    %21 = arith.mulf %17, %17 : vector<64x128xf32>
    %cst_6 = arith.constant dense<0.000000e+00> : vector<64xf32>
    %22 = vector.multi_reduction <add>, %21, %cst_6 [1] : vector<64x128xf32> to vector<64xf32>
    %23 = vector.shape_cast %22 : vector<64xf32> to vector<64x1xf32>
    %24 = arith.addf %20, %23 : vector<64x1xf32>
    %cst_7 = arith.constant 3.906250e-03 : f32
    %25 = vector.broadcast %cst_7 : f32 to vector<64x1xf32>
    %26 = arith.mulf %24, %25 : vector<64x1xf32>
    %cst_8 = arith.constant 9.99999974E-6 : f32
    %27 = vector.broadcast %cst_8 : f32 to vector<64x1xf32>
    %28 = arith.addf %26, %27 : vector<64x1xf32>
    %29 = math.rsqrt %28 : vector<64x1xf32>
    %c0_9 = arith.constant 0 : index
    %c0_10 = arith.constant 0 : index
    %30 = vector.load %arg2[%c0_9, %c0_10] : memref<128x128xf32, #tpu.memory_space<vmem>>, vector<128x128xf32>
    %cst_11 = arith.constant dense<0.000000e+00> : vector<64x128xf32>
    %31 = tpu.matmul %15, %30, %cst_11 {dimension_numbers = #tpu.dot_dimension_numbers<[1], [0], [0], [1], [0, 0, 1, 1], [], []>} : vector<64x128xf32>, vector<128x128xf32>, vector<64x128xf32> -> vector<64x128xf32>
    %c0_12 = arith.constant 0 : index
    %c0_13 = arith.constant 0 : index
    %32 = vector.load %arg3[%c0_12, %c0_13] : memref<128x128xf32, #tpu.memory_space<vmem>>, vector<128x128xf32>
    %cst_14 = arith.constant dense<0.000000e+00> : vector<64x128xf32>
    %33 = tpu.matmul %17, %32, %cst_14 {dimension_numbers = #tpu.dot_dimension_numbers<[1], [0], [0], [1], [0, 0, 1, 1], [], []>} : vector<64x128xf32>, vector<128x128xf32>, vector<64x128xf32> -> vector<64x128xf32>
    %34 = arith.addf %31, %33 : vector<64x128xf32>
    %35 = vector.broadcast %29 : vector<64x1xf32> to vector<64x128xf32>
    %36 = arith.mulf %35, %34 : vector<64x128xf32>
    %c0_15 = arith.constant 0 : index
    %c0_16 = arith.constant 0 : index
    %37 = vector.load %arg4[%c0_15, %c0_16] : memref<1x128xf32, #tpu.memory_space<vmem>>, vector<1x128xf32>
    %38 = vector.broadcast %37 : vector<1x128xf32> to vector<64x128xf32>
    %39 = arith.addf %36, %38 : vector<64x128xf32>
    %c0_17 = arith.constant 0 : index
    %c0_18 = arith.constant 0 : index
    %40 = vector.load %arg5[%c0_17, %c0_18] : memref<64x128xf32, #tpu.memory_space<vmem>>, vector<64x128xf32>
    tpu.vector_store %arg5[%c0_17, %c0_18], %39 {strides = array<i32>} : memref<64x128xf32, #tpu.memory_space<vmem>>, vector<64x128xf32>,
    return
  }
  func.func @transform_0(%arg0: i32) -> (i32, i32, i32, i32) {
    %c0_i32 = arith.constant 0 : i32
    %c0_i32_0 = arith.constant 0 : i32
    %c0_i32_1 = arith.constant 0 : i32
    %c0_i32_2 = arith.constant 0 : i32
    return %arg0, %c0_i32, %c0_i32_0, %c0_i32_1 : i32, i32, i32, i32
  }
  func.func @transform_1(%arg0: i32) -> (i32, i32) {
    %c0_i32 = arith.constant 0 : i32
    %c0_i32_0 = arith.constant 0 : i32
    %c0_i32_1 = arith.constant 0 : i32
    return %c0_i32, %c0_i32_0 : i32, i32
  }
  func.func @transform_2(%arg0: i32) -> (i32, i32) {
    %c0_i32 = arith.constant 0 : i32
    %c0_i32_0 = arith.constant 0 : i32
    %c0_i32_1 = arith.constant 0 : i32
    return %c0_i32, %c0_i32_0 : i32, i32
  }
  func.func @transform_3(%arg0: i32) -> (i32, i32) {
    %c0_i32 = arith.constant 0 : i32
    %c0_i32_0 = arith.constant 0 : i32
    %c0_i32_1 = arith.constant 0 : i32
    return %c0_i32, %c0_i32_0 : i32, i32
  }
  func.func @transform_4(%arg0: i32) -> (i32, i32) {
    %c0_i32 = arith.constant 0 : i32
    %c0_i32_0 = arith.constant 0 : i32
    return %arg0, %c0_i32 : i32, i32
  }
}

</mosaic_0001>

<llo_original>
// kernel: patch_merging_forward.1
$region0: #{patch_merging_forward.1}
  #allocation0 [shape = 'u32[]', space=smem, size = 0x4, offset = 0x4, fixed_abs, tag = 'smem constant byte address 0x4 - core index']
  #allocation1 [shape = 'u32[144,128]{1,0:T(1,128)}', space=vmem, size = 0x12000, scoped, tag = 'internal scratch']
  %s0 = inlined_call_operand.vmem [shape: f32[16,2,8,128], index: 0, kind: input, shape index: {}]
  %s1 = inlined_call_operand.vmem [shape: f32[128,128], index: 1, kind: input, shape index: {}]
  %s2 = inlined_call_operand.vmem [shape: f32[128,128], index: 2, kind: input, shape index: {}]
  %s3 = inlined_call_operand.vmem [shape: f32[1,128], index: 3, kind: input, shape index: {}]
  %s4 = inlined_call_operand.hbm [shape: f32[128,128], index: 4, kind: output, shape index: {}]
  %s5 = sld [smem:[#allocation0]]
  $region49: #{patch_merging_forward.1} parent=0
    _
  %s7 = ssub.s32 1, %s5
  %s8 = scalar_select 0, %s7, %s5
  $region1: #{patch_merging_forward.1} parent=0
    #allocation2 [shape = 'u8[65536]{0}', space=vmem, size = 0x10000, scoped, tag = 'output window, operand 0']
    #allocation3 [shape = 's32[2]{0}', space=sflag, size = 0x8, scoped, tag = 'scoped memory for patch_merging_forward.1']
    %9 = vsyncpa [#allocation3], 0
    %s10 = scalar_lea.sflag [#allocation3], 1
    %11 = vsyncpa %s10, 0
    loop: start=0, step=1, limit=4
    $region2: #{patch_merging_forward.1} parent=1 // loop_pre_header
      _
    $region3: #{patch_merging_forward.1} parent=1 // loop_header
      %s13 = sphi 0, %s17
      %p14 = scmp.ge.s32.totalorder %s13, 4
      %s23 = sphi 0, %s25
      %s26 = sphi 0, %s23
      %s27 = sphi 0, %s26
      %s43 = sphi 0, %s27
      %s47 = sphi 0, %s47
      %s49 = sphi 0, %s47
      %s50 = sphi 0, %s49
      %s64 = sphi 0, %s50
      %s68 = sphi 0, %s68
      %s70 = sphi 0, %s68
      %s71 = sphi 0, %s70
      %s85 = sphi 0, %s71
      %s89 = sphi 0, %s89
      %s91 = sphi 0, %s89
      %s92 = sphi 0, %s91
      %s106 = sphi 0, %s92
      %s112 = sphi 0, %s114
      %s115 = sphi 0, %s112
      %s116 = sphi 0, %s115
      %s132 = sphi 0, %s116
    $region4: #{patch_merging_forward.1} parent=1 // loop_header_branch
      %16 = sbr.rel (%p14) target = $region8
    $region5: #{patch_merging_forward.1} parent=1 // loop_body
      %s18 = ssub.s32 %s13, 1
      %s19 = ssub.s32 %s13, 2
      %s20 = sadd.s32 %s13, 1
      %s21 = ssub.s32 %s13, %s20
      %p22 = scmp.eq.s32.totalorder %s21, 0
      %s24 = sadd.s32 %s23, 1
      %s25 = scalar_select %p22, %s23, %s24
      %p28 = pneg %p22
      %p29 = scmp.eq.s32.totalorder %s13, 1
      %p30 = por %p28, %p29
      %p31 = scmp.ne.s32.totalorder %s23, %s26
      %p32 = scmp.eq.s32.totalorder %s13, 0
      %p33 = por %p31, %p32
      %p34 = scmp.ne.s32.totalorder %s23, %s26
      %p35 = scmp.eq.s32.totalorder %s18, 1
      %p36 = por %p34, %p35
      %p37 = scmp.ne.s32.totalorder %s26, %s27
      %p38 = scmp.eq.s32.totalorder %s18, 0
      %p39 = por %p37, %p38
      %p40 = scmp.ne.s32.totalorder %s26, %s27
      %p41 = scmp.eq.s32.totalorder %s19, 1
      %p42 = por %p40, %p41
      %p44 = scmp.ne.s32.totalorder %s27, %s43
      %p45 = scmp.eq.s32.totalorder %s19, 0
      %p46 = por %p44, %p45
      %s48 = sadd.s32 %s47, 1
      %p51 = scmp.eq.s32.totalorder %s13, 1
      %p52 = scmp.ne.s32.totalorder %s47, %s49
      %p53 = scmp.eq.s32.totalorder %s13, 0
      %p54 = por %p52, %p53
      %p55 = scmp.ne.s32.totalorder %s47, %s49
      %p56 = scmp.eq.s32.totalorder %s18, 1
      %p57 = por %p55, %p56
      %p58 = scmp.ne.s32.totalorder %s49, %s50
      %p59 = scmp.eq.s32.totalorder %s18, 0
      %p60 = por %p58, %p59
      %p61 = scmp.ne.s32.totalorder %s49, %s50
      %p62 = scmp.eq.s32.totalorder %s19, 1
      %p63 = por %p61, %p62
      %p65 = scmp.ne.s32.totalorder %s50, %s64
      %p66 = scmp.eq.s32.totalorder %s19, 0
      %p67 = por %p65, %p66
      %s69 = sadd.s32 %s68, 1
      %p72 = scmp.eq.s32.totalorder %s13, 1
      %p73 = scmp.ne.s32.totalorder %s68, %s70
      %p74 = scmp.eq.s32.totalorder %s13, 0
      %p75 = por %p73, %p74
      %p76 = scmp.ne.s32.totalorder %s68, %s70
      %p77 = scmp.eq.s32.totalorder %s18, 1
      %p78 = por %p76, %p77
      %p79 = scmp.ne.s32.totalorder %s70, %s71
      %p80 = scmp.eq.s32.totalorder %s18, 0
      %p81 = por %p79, %p80
      %p82 = scmp.ne.s32.totalorder %s70, %s71
      %p83 = scmp.eq.s32.totalorder %s19, 1
      %p84 = por %p82, %p83
      %p86 = scmp.ne.s32.totalorder %s71, %s85
      %p87 = scmp.eq.s32.totalorder %s19, 0
      %p88 = por %p86, %p87
      %s90 = sadd.s32 %s89, 1
      %p93 = scmp.eq.s32.totalorder %s13, 1
      %p94 = scmp.ne.s32.totalorder %s89, %s91
      %p95 = scmp.eq.s32.totalorder %s13, 0
      %p96 = por %p94, %p95
      %p97 = scmp.ne.s32.totalorder %s89, %s91
      %p98 = scmp.eq.s32.totalorder %s18, 1
      %p99 = por %p97, %p98
      %p100 = scmp.ne.s32.totalorder %s91, %s92
      %p101 = scmp.eq.s32.totalorder %s18, 0
      %p102 = por %p100, %p101
      %p103 = scmp.ne.s32.totalorder %s91, %s92
      %p104 = scmp.eq.s32.totalorder %s19, 1
      %p105 = por %p103, %p104
      %p107 = scmp.ne.s32.totalorder %s92, %s106
      %p108 = scmp.eq.s32.totalorder %s19, 0
      %p109 = por %p107, %p108
      %s110 = ssub.s32 %s13, %s20
      %p111 = scmp.eq.s32.totalorder %s110, 0
      %s113 = sadd.s32 %s112, 1
      %s114 = scalar_select %p111, %s112, %s113
      %p117 = pneg %p111
      %p118 = scmp.eq.s32.totalorder %s13, 1
      %p119 = por %p117, %p118
      %p120 = scmp.ne.s32.totalorder %s112, %s115
      %p121 = scmp.eq.s32.totalorder %s13, 0
      %p122 = por %p120, %p121
      %p123 = scmp.ne.s32.totalorder %s112, %s115
      %p124 = scmp.eq.s32.totalorder %s18, 1
      %p125 = por %p123, %p124
      %p126 = scmp.ne.s32.totalorder %s115, %s116
      %p127 = scmp.eq.s32.totalorder %s18, 0
      %p128 = por %p126, %p127
      %p129 = scmp.ne.s32.totalorder %s115, %s116
      %p130 = scmp.eq.s32.totalorder %s19, 1
      %p131 = por %p129, %p130
      %p133 = scmp.ne.s32.totalorder %s116, %s132
      %p134 = scmp.eq.s32.totalorder %s19, 0
      %p135 = por %p133, %p134
      %p136 = scmp.le.s32.totalorder 1, %s13
      %p137 = scmp.lt.s32.totalorder %s13, 3
      %p138 = pnand %p136, %p137
      %p139 = pneg %p138
      // Predicated region
      $region9: #{patch_merging_forward.1} parent=5 // pred_check
        _
      $region10: #{patch_merging_forward.1} parent=5 // pred_check_branch
        %141 = sbr.rel (%p138) target = $region12
      $region11: #{patch_merging_forward.1} parent=5 // pred_region
        %s142 = ssub.s32 %s13, 1
        // Predicated region
        $region13: #{patch_merging_forward.1} parent=11 // pred_check
          %p143 = pneg %p60
        $region14: #{patch_merging_forward.1} parent=11 // pred_check_branch
          %145 = sbr.rel (%p143) target = $region16
        $region15: #{patch_merging_forward.1} parent=11 // pred_region
          _
        $region16: #{patch_merging_forward.1} parent=11 // pred_fallthru
          _
        // Predicated region
        $region17: #{patch_merging_forward.1} parent=11 // pred_check
          %p146 = pneg %p81
        $region18: #{patch_merging_forward.1} parent=11 // pred_check_branch
          %148 = sbr.rel (%p146) target = $region20
        $region19: #{patch_merging_forward.1} parent=11 // pred_region
          _
        $region20: #{patch_merging_forward.1} parent=11 // pred_fallthru
          _
        // Predicated region
        $region21: #{patch_merging_forward.1} parent=11 // pred_check
          %p149 = pneg %p102
        $region22: #{patch_merging_forward.1} parent=11 // pred_check_branch
          %151 = sbr.rel (%p149) target = $region24
        $region23: #{patch_merging_forward.1} parent=11 // pred_region
          _
        $region24: #{patch_merging_forward.1} parent=11 // pred_fallthru
          _
      $region12: #{patch_merging_forward.1} parent=5 // pred_fallthru
        _
      %p152 = scmp.lt.s32.totalorder %s13, 2
      // Predicated region
      $region25: #{patch_merging_forward.1} parent=5 // pred_check
        %p153 = pneg %p152
      $region26: #{patch_merging_forward.1} parent=5 // pred_check_branch
        %155 = sbr.rel (%p153) target = $region28
      $region27: #{patch_merging_forward.1} parent=5 // pred_region
        // Predicated region
        $region29: #{patch_merging_forward.1} parent=27 // pred_check
          %p156 = pneg %p33
        $region30: #{patch_merging_forward.1} parent=27 // pred_check_branch
          %158 = sbr.rel (%p156) target = $region32
        $region31: #{patch_merging_forward.1} parent=27 // pred_region
          %s159 = smul.u32 8, %s13
          %p160 = scmp.lt.s32.totalorder %s159, 15
          %s161 = scalar_select %p160, %s159, 15
          %s162 = smul.addr %s161, 2
          %s163 = smul.addr %s162, 8
          %s164 = scalar_lea.vmem %s0, %s163
          %s165 = smul.u32 8, %s13
        $region32: #{patch_merging_forward.1} parent=27 // pred_fallthru
          _
      $region28: #{patch_merging_forward.1} parent=5 // pred_fallthru
        _
      %p166 = scmp.le.s32.totalorder 1, %s13
      %p167 = scmp.lt.s32.totalorder %s13, 3
      %p168 = pnand %p166, %p167
      %p169 = pneg %p168
      // Predicated region
      $region33: #{patch_merging_forward.1} parent=5 // pred_check
        _
      $region34: #{patch_merging_forward.1} parent=5 // pred_check_branch
        %171 = sbr.rel (%p168) target = $region36
      $region35: #{patch_merging_forward.1} parent=5 // pred_region
        %s172 = ssub.s32 %s13, 1
        %s173 = smul.u32 8, %s18
        %p174 = scmp.lt.s32.totalorder %s173, 15
        %s175 = scalar_select %p174, %s173, 15
        %s176 = smul.addr %s175, 2
        %s177 = smul.addr %s176, 8
        %s178 = scalar_lea.vmem %s0, %s177
        %p179 = pneg %p39
        %p180 = pneg %p36
        %p181 = pneg %p60
        %p182 = pneg %p57
        %p183 = pneg %p81
        %p184 = pneg %p78
        %p185 = pneg %p102
        %p186 = pneg %p99
        %p187 = pneg %p128
        %p188 = pneg %p125
        %s189 = sand.u32 %s115, 1
        %s190 = scalar_lea.sflag [#allocation3], %s189
        %s191 = sand.u32 %s115, 1
        %s192 = smul.addr %s191, 64
        %s193 = scalar_lea.vmem [#allocation2], %s192
        %s194 = smul.u32 8, %s18
        %p195 = scmp.lt.s32.totalorder %s194, 15
        %s196 = scalar_select %p195, %s194, 15
        %s197 = smul.addr %s196, 2
        %s198 = smul.addr %s197, 8
        %s199 = scalar_lea.vmem %s0, %s198
        %s200 = smul.u32 8, %s18
        %s201 = smul.u32 8, %s18
        %v202 = vld [vmem:[%s199] sm:$0xff]
        %v203 = vld [vmem:[%s199 + $0x8] sm:$0xff]
        %v204 = vld [vmem:[%s199 + $0x10] sm:$0xff]
        %v205 = vld [vmem:[%s199 + $0x18] sm:$0xff]
        %v206 = vld [vmem:[%s199 + $0x20] sm:$0xff]
        %v207 = vld [vmem:[%s199 + $0x28] sm:$0xff]
        %v208 = vld [vmem:[%s199 + $0x30] sm:$0xff]
        %v209 = vld [vmem:[%s199 + $0x38] sm:$0xff]
        %v210 = vld [vmem:[%s199 + $0x40] sm:$0xff]
        %v211 = vld [vmem:[%s199 + $0x48] sm:$0xff]
        %v212 = vld [vmem:[%s199 + $0x50] sm:$0xff]
        %v213 = vld [vmem:[%s199 + $0x58] sm:$0xff]
        %v214 = vld [vmem:[%s199 + $0x60] sm:$0xff]
        %v215 = vld [vmem:[%s199 + $0x68] sm:$0xff]
        %v216 = vld [vmem:[%s199 + $0x70] sm:$0xff]
        %v217 = vld [vmem:[%s199 + $0x78] sm:$0xff]
        %218 = vadd.xlane.f32.xlu0 %v202
        %v219 = vpop.xlane.xlu0 %218
        %220 = vadd.xlane.f32.xlu0 %v204
        %v221 = vpop.xlane.xlu0 %220
        %222 = vadd.xlane.f32.xlu0 %v206
        %v223 = vpop.xlane.xlu0 %222
        %224 = vadd.xlane.f32.xlu0 %v208
        %v225 = vpop.xlane.xlu0 %224
        %226 = vadd.xlane.f32.xlu0 %v210
        %v227 = vpop.xlane.xlu0 %226
        %228 = vadd.xlane.f32.xlu0 %v212
        %v229 = vpop.xlane.xlu0 %228
        %230 = vadd.xlane.f32.xlu0 %v214
        %v231 = vpop.xlane.xlu0 %230
        %232 = vadd.xlane.f32.xlu0 %v216
        %v233 = vpop.xlane.xlu0 %232
        %234 = vadd.xlane.f32.xlu0 %v203
        %v235 = vpop.xlane.xlu0 %234
        %236 = vadd.xlane.f32.xlu0 %v205
        %v237 = vpop.xlane.xlu0 %236
        %238 = vadd.xlane.f32.xlu0 %v207
        %v239 = vpop.xlane.xlu0 %238
        %240 = vadd.xlane.f32.xlu0 %v209
        %v241 = vpop.xlane.xlu0 %240
        %242 = vadd.xlane.f32.xlu0 %v211
        %v243 = vpop.xlane.xlu0 %242
        %244 = vadd.xlane.f32.xlu0 %v213
        %v245 = vpop.xlane.xlu0 %244
        %246 = vadd.xlane.f32.xlu0 %v215
        %v247 = vpop.xlane.xlu0 %246
        %248 = vadd.xlane.f32.xlu0 %v217
        %v249 = vpop.xlane.xlu0 %248
        %v250 = vadd.f32 %v219, %v235
        %v251 = vadd.f32 %v221, %v237
        %v252 = vadd.f32 %v223, %v239
        %v253 = vadd.f32 %v225, %v241
        %v254 = vadd.f32 %v227, %v243
        %v255 = vadd.f32 %v229, %v245
        %v256 = vadd.f32 %v231, %v247
        %v257 = vadd.f32 %v233, %v249
        %v258 = vmul.f32 %v250, 0.00390625
        %v259 = vmul.f32 %v251, 0.00390625
        %v260 = vmul.f32 %v252, 0.00390625
        %v261 = vmul.f32 %v253, 0.00390625
        %v262 = vmul.f32 %v254, 0.00390625
        %v263 = vmul.f32 %v255, 0.00390625
        %v264 = vmul.f32 %v256, 0.00390625
        %v265 = vmul.f32 %v257, 0.00390625
        %v266 = vsub.f32 %v202, %v258
        %v267 = vsub.f32 %v204, %v259
        %v268 = vsub.f32 %v206, %v260
        %v269 = vsub.f32 %v208, %v261
        %v270 = vsub.f32 %v210, %v262
        %v271 = vsub.f32 %v212, %v263
        %v272 = vsub.f32 %v214, %v264
        %v273 = vsub.f32 %v216, %v265
        %v274 = vsub.f32 %v203, %v258
        %v275 = vsub.f32 %v205, %v259
        %v276 = vsub.f32 %v207, %v260
        %v277 = vsub.f32 %v209, %v261
        %v278 = vsub.f32 %v211, %v262
        %v279 = vsub.f32 %v213, %v263
        %v280 = vsub.f32 %v215, %v264
        %v281 = vsub.f32 %v217, %v265
        %v282 = vmul.f32 %v266, %v266
        %v283 = vmul.f32 %v267, %v267
        %v284 = vmul.f32 %v268, %v268
        %v285 = vmul.f32 %v269, %v269
        %v286 = vmul.f32 %v270, %v270
        %v287 = vmul.f32 %v271, %v271
        %v288 = vmul.f32 %v272, %v272
        %v289 = vmul.f32 %v273, %v273
        %290 = vadd.xlane.f32.xlu0 %v282
        %v291 = vpop.xlane.xlu0 %290
        %292 = vadd.xlane.f32.xlu0 %v283
        %v293 = vpop.xlane.xlu0 %292
        %294 = vadd.xlane.f32.xlu0 %v284
        %v295 = vpop.xlane.xlu0 %294
        %296 = vadd.xlane.f32.xlu0 %v285
        %v297 = vpop.xlane.xlu0 %296
        %298 = vadd.xlane.f32.xlu0 %v286
        %v299 = vpop.xlane.xlu0 %298
        %300 = vadd.xlane.f32.xlu0 %v287
        %v301 = vpop.xlane.xlu0 %300
        %302 = vadd.xlane.f32.xlu0 %v288
        %v303 = vpop.xlane.xlu0 %302
        %304 = vadd.xlane.f32.xlu0 %v289
        %v305 = vpop.xlane.xlu0 %304
        %v306 = vmul.f32 %v274, %v274
        %v307 = vmul.f32 %v275, %v275
        %v308 = vmul.f32 %v276, %v276
        %v309 = vmul.f32 %v277, %v277
        %v310 = vmul.f32 %v278, %v278
        %v311 = vmul.f32 %v279, %v279
        %v312 = vmul.f32 %v280, %v280
        %v313 = vmul.f32 %v281, %v281
        %314 = vadd.xlane.f32.xlu0 %v306
        %v315 = vpop.xlane.xlu0 %314
        %316 = vadd.xlane.f32.xlu0 %v307
        %v317 = vpop.xlane.xlu0 %316
        %318 = vadd.xlane.f32.xlu0 %v308
        %v319 = vpop.xlane.xlu0 %318
        %320 = vadd.xlane.f32.xlu0 %v309
        %v321 = vpop.xlane.xlu0 %320
        %322 = vadd.xlane.f32.xlu0 %v310
        %v323 = vpop.xlane.xlu0 %322
        %324 = vadd.xlane.f32.xlu0 %v311
        %v325 = vpop.xlane.xlu0 %324
        %326 = vadd.xlane.f32.xlu0 %v312
        %v327 = vpop.xlane.xlu0 %326
        %328 = vadd.xlane.f32.xlu0 %v313
        %v329 = vpop.xlane.xlu0 %328
        %v330 = vadd.f32 %v291, %v315
        %v331 = vadd.f32 %v293, %v317
        %v332 = vadd.f32 %v295, %v319
        %v333 = vadd.f32 %v297, %v321
        %v334 = vadd.f32 %v299, %v323
        %v335 = vadd.f32 %v301, %v325
        %v336 = vadd.f32 %v303, %v327
        %v337 = vadd.f32 %v305, %v329
        %v338 = vmul.f32 %v330, 0.00390625
        %v339 = vmul.f32 %v331, 0.00390625
        %v340 = vmul.f32 %v332, 0.00390625
        %v341 = vmul.f32 %v333, 0.00390625
        %v342 = vmul.f32 %v334, 0.00390625
        %v343 = vmul.f32 %v335, 0.00390625
        %v344 = vmul.f32 %v336, 0.00390625
        %v345 = vmul.f32 %v337, 0.00390625
        %v346 = vadd.f32 %v338, 1e-05
        %v347 = vadd.f32 %v339, 1e-05
        %v348 = vadd.f32 %v340, 1e-05
        %v349 = vadd.f32 %v341, 1e-05
        %v350 = vadd.f32 %v342, 1e-05
        %v351 = vadd.f32 %v343, 1e-05
        %v352 = vadd.f32 %v344, 1e-05
        %v353 = vadd.f32 %v345, 1e-05
        %v354 = vrsqrt.pop %v346
        %v355 = vrsqrt.pop %v347
        %v356 = vrsqrt.pop %v348
        %v357 = vrsqrt.pop %v349
        %v358 = vrsqrt.pop %v350
        %v359 = vrsqrt.pop %v351
        %v360 = vrsqrt.pop %v352
        %v361 = vrsqrt.pop %v353
        %v362 = vld [vmem:[%s1] sm:$0xff]
        %v363 = vld [vmem:[%s1 + $0x8] sm:$0xff]
        %v364 = vld [vmem:[%s1 + $0x10] sm:$0xff]
        %v365 = vld [vmem:[%s1 + $0x18] sm:$0xff]
        %v366 = vld [vmem:[%s1 + $0x20] sm:$0xff]
        %v367 = vld [vmem:[%s1 + $0x28] sm:$0xff]
        %v368 = vld [vmem:[%s1 + $0x30] sm:$0xff]
        %v369 = vld [vmem:[%s1 + $0x38] sm:$0xff]
        %v370 = vld [vmem:[%s1 + $0x40] sm:$0xff]
        %v371 = vld [vmem:[%s1 + $0x48] sm:$0xff]
        %v372 = vld [vmem:[%s1 + $0x50] sm:$0xff]
        %v373 = vld [vmem:[%s1 + $0x58] sm:$0xff]
        %v374 = vld [vmem:[%s1 + $0x60] sm:$0xff]
        %v375 = vld [vmem:[%s1 + $0x68] sm:$0xff]
        %v376 = vld [vmem:[%s1 + $0x70] sm:$0xff]
        %v377 = vld [vmem:[%s1 + $0x78] sm:$0xff]
        %v378 = vld [vmem:[%s2] sm:$0xff]
        %v379 = vld [vmem:[%s2 + $0x8] sm:$0xff]
        %v380 = vld [vmem:[%s2 + $0x10] sm:$0xff]
        %v381 = vld [vmem:[%s2 + $0x18] sm:$0xff]
        %v382 = vld [vmem:[%s2 + $0x20] sm:$0xff]
        %v383 = vld [vmem:[%s2 + $0x28] sm:$0xff]
        %v384 = vld [vmem:[%s2 + $0x30] sm:$0xff]
        %v385 = vld [vmem:[%s2 + $0x38] sm:$0xff]
        %v386 = vld [vmem:[%s2 + $0x40] sm:$0xff]
        %v387 = vld [vmem:[%s2 + $0x48] sm:$0xff]
        %v388 = vld [vmem:[%s2 + $0x50] sm:$0xff]
        %v389 = vld [vmem:[%s2 + $0x58] sm:$0xff]
        %v390 = vld [vmem:[%s2 + $0x60] sm:$0xff]
        %v391 = vld [vmem:[%s2 + $0x68] sm:$0xff]
        %v392 = vld [vmem:[%s2 + $0x70] sm:$0xff]
        %v393 = vld [vmem:[%s2 + $0x78] sm:$0xff]
        %394 = vmatprep.subr.mxu0 0.0
        %395 = vmatpush1.msra.mxu0 %v378
        %396 = vmatprep.subr.mxu0 0.0
        %397 = vmatpush1.msra.mxu0 %v379
        %398 = vmatprep.subr.mxu0 0.0
        %399 = vmatpush1.msra.mxu0 %v380
        %400 = vmatprep.subr.mxu0 0.0
        %401 = vmatpush1.msra.mxu0 %v381
        %402 = vmatprep.subr.mxu0 0.0
        %403 = vmatpush1.msra.mxu0 %v382
        %404 = vmatprep.subr.mxu0 0.0
        %405 = vmatpush1.msra.mxu0 %v383
        %406 = vmatprep.subr.mxu0 0.0
        %407 = vmatpush1.msra.mxu0 %v384
        %408 = vmatprep.subr.mxu0 0.0
        %409 = vmatpush1.msra.mxu0 %v385
        %410 = vmatprep.subr.mxu0 0.0
        %411 = vmatpush1.msra.mxu0 %v386
        %412 = vmatprep.subr.mxu0 0.0
        %413 = vmatpush1.msra.mxu0 %v387
        %414 = vmatprep.subr.mxu0 0.0
        %415 = vmatpush1.msra.mxu0 %v388
        %416 = vmatprep.subr.mxu0 0.0
        %417 = vmatpush1.msra.mxu0 %v389
        %418 = vmatprep.subr.mxu0 0.0
        %419 = vmatpush1.msra.mxu0 %v390
        %420 = vmatprep.subr.mxu0 0.0
        %421 = vmatpush1.msra.mxu0 %v391
        %422 = vmatprep.subr.mxu0 0.0
        %423 = vmatpush1.msra.mxu0 %v392
        %424 = vmatprep.subr.mxu0 0.0
        %425 = vmatpush1.msra.mxu0 %v393
        %426 = vmatprep.subr.mxu0 0.0
        %427 = vmatpush1.msra.mxu0 0.0
        %428 = vmatprep.subr.mxu0 0.0
        %429 = vmatpush1.msra.mxu0 0.0
        %430 = vmatprep.subr.mxu0 0.0
        %431 = vmatpush1.msra.mxu0 0.0
        %432 = vmatprep.subr.mxu0 0.0
        %433 = vmatpush1.msra.mxu0 0.0
        %434 = vmatprep.subr.mxu0 0.0
        %435 = vmatpush1.msra.mxu0 0.0
        %436 = vmatprep.subr.mxu0 0.0
        %437 = vmatpush1.msra.mxu0 0.0
        %438 = vmatprep.subr.mxu0 0.0
        %439 = vmatpush1.msra.mxu0 0.0
        %440 = vmatprep.subr.mxu0 0.0
        %441 = vmatpush1.msra.mxu0 0.0
        %442 = vmatprep.subr.mxu0 0.0
        %443 = vmatpush1.msra.mxu0 0.0
        %444 = vmatprep.subr.mxu0 0.0
        %445 = vmatpush1.msra.mxu0 0.0
        %446 = vmatprep.subr.mxu0 0.0
        %447 = vmatpush1.msra.mxu0 0.0
        %448 = vmatprep.subr.mxu0 0.0
        %449 = vmatpush1.msra.mxu0 0.0
        %450 = vmatprep.subr.mxu0 0.0
        %451 = vmatpush1.msra.mxu0 0.0
        %452 = vmatprep.subr.mxu0 0.0
        %453 = vmatpush1.msra.mxu0 0.0
        %454 = vmatprep.subr.mxu0 0.0
        %455 = vmatpush1.msra.mxu0 0.0
        %456 = vmatprep.subr.mxu0 0.0
        %457 = vmatpush1.msra.mxu0 0.0
        %458 = vmatprep.mubr.f32.mxu0 0.0
        %459 = vmatmul.mubr.f32.gmra.mrb[0].mxu0 %v274
        %v460 = vpop.f32.mrb[0].mxu0
        %v461 = vadd.f32 0.0, %v460
        %v462 = vpop.f32.mrb[0].mxu0
        %463 = vmatprep.mubr.f32.mxu0 0.0
        %464 = vmatmul.mubr.f32.gmra.mrb[0].mxu0 %v275
        %v465 = vpop.f32.mrb[0].mxu0
        %v466 = vadd.f32 0.0, %v465
        %v467 = vpop.f32.mrb[0].mxu0
        %468 = vmatprep.mubr.f32.mxu0 0.0
        %469 = vmatmul.mubr.f32.gmra.mrb[0].mxu0 %v276
        %v470 = vpop.f32.mrb[0].mxu0
        %v471 = vadd.f32 0.0, %v470
        %v472 = vpop.f32.mrb[0].mxu0
        %473 = vmatprep.mubr.f32.mxu0 0.0
        %474 = vmatmul.mubr.f32.gmra.mrb[0].mxu0 %v277
        %v475 = vpop.f32.mrb[0].mxu0
        %v476 = vadd.f32 0.0, %v475
        %v477 = vpop.f32.mrb[0].mxu0
        %478 = vmatprep.mubr.f32.mxu0 0.0
        %479 = vmatmul.mubr.f32.gmra.mrb[0].mxu0 %v278
        %v480 = vpop.f32.mrb[0].mxu0
        %v481 = vadd.f32 0.0, %v480
        %v482 = vpop.f32.mrb[0].mxu0
        %483 = vmatprep.mubr.f32.mxu0 0.0
        %484 = vmatmul.mubr.f32.gmra.mrb[0].mxu0 %v279
        %v485 = vpop.f32.mrb[0].mxu0
        %v486 = vadd.f32 0.0, %v485
        %v487 = vpop.f32.mrb[0].mxu0
        %488 = vmatprep.mubr.f32.mxu0 0.0
        %489 = vmatmul.mubr.f32.gmra.mrb[0].mxu0 %v280
        %v490 = vpop.f32.mrb[0].mxu0
        %v491 = vadd.f32 0.0, %v490
        %v492 = vpop.f32.mrb[0].mxu0
        %493 = vmatprep.mubr.f32.mxu0 0.0
        %494 = vmatmul.mubr.f32.gmra.mrb[0].mxu0 %v281
        %v495 = vpop.f32.mrb[0].mxu0
        %v496 = vadd.f32 0.0, %v495
        %v497 = vpop.f32.mrb[0].mxu0
        %498 = vdwg.mxu0
        %499 = vmatprep.subr.mxu0 0.0
        %500 = vmatpush1.msra.mxu0 %v362
        %501 = vmatprep.subr.mxu0 0.0
        %502 = vmatpush1.msra.mxu0 %v363
        %503 = vmatprep.subr.mxu0 0.0
        %504 = vmatpush1.msra.mxu0 %v364
        %505 = vmatprep.subr.mxu0 0.0
        %506 = vmatpush1.msra.mxu0 %v365
        %507 = vmatprep.subr.mxu0 0.0
        %508 = vmatpush1.msra.mxu0 %v366
        %509 = vmatprep.subr.mxu0 0.0
        %510 = vmatpush1.msra.mxu0 %v367
        %511 = vmatprep.subr.mxu0 0.0
        %512 = vmatpush1.msra.mxu0 %v368
        %513 = vmatprep.subr.mxu0 0.0
        %514 = vmatpush1.msra.mxu0 %v369
        %515 = vmatprep.subr.mxu0 0.0
        %516 = vmatpush1.msra.mxu0 %v370
        %517 = vmatprep.subr.mxu0 0.0
        %518 = vmatpush1.msra.mxu0 %v371
        %519 = vmatprep.subr.mxu0 0.0
        %520 = vmatpush1.msra.mxu0 %v372
        %521 = vmatprep.subr.mxu0 0.0
        %522 = vmatpush1.msra.mxu0 %v373
        %523 = vmatprep.subr.mxu0 0.0
        %524 = vmatpush1.msra.mxu0 %v374
        %525 = vmatprep.subr.mxu0 0.0
        %526 = vmatpush1.msra.mxu0 %v375
        %527 = vmatprep.subr.mxu0 0.0
        %528 = vmatpush1.msra.mxu0 %v376
        %529 = vmatprep.subr.mxu0 0.0
        %530 = vmatpush1.msra.mxu0 %v377
        %531 = vmatprep.subr.mxu0 0.0
        %532 = vmatpush1.msra.mxu0 0.0
        %533 = vmatprep.subr.mxu0 0.0
        %534 = vmatpush1.msra.mxu0 0.0
        %535 = vmatprep.subr.mxu0 0.0
        %536 = vmatpush1.msra.mxu0 0.0
        %537 = vmatprep.subr.mxu0 0.0
        %538 = vmatpush1.msra.mxu0 0.0
        %539 = vmatprep.subr.mxu0 0.0
        %540 = vmatpush1.msra.mxu0 0.0
        %541 = vmatprep.subr.mxu0 0.0
        %542 = vmatpush1.msra.mxu0 0.0
        %543 = vmatprep.subr.mxu0 0.0
        %544 = vmatpush1.msra.mxu0 0.0
        %545 = vmatprep.subr.mxu0 0.0
        %546 = vmatpush1.msra.mxu0 0.0
        %547 = vmatprep.subr.mxu0 0.0
        %548 = vmatpush1.msra.mxu0 0.0
        %549 = vmatprep.subr.mxu0 0.0
        %550 = vmatpush1.msra.mxu0 0.0
        %551 = vmatprep.subr.mxu0 0.0
        %552 = vmatpush1.msra.mxu0 0.0
        %553 = vmatprep.subr.mxu0 0.0
        %554 = vmatpush1.msra.mxu0 0.0
        %555 = vmatprep.subr.mxu0 0.0
        %556 = vmatpush1.msra.mxu0 0.0
        %557 = vmatprep.subr.mxu0 0.0
        %558 = vmatpush1.msra.mxu0 0.0
        %559 = vmatprep.subr.mxu0 0.0
        %560 = vmatpush1.msra.mxu0 0.0
        %561 = vmatprep.subr.mxu0 0.0
        %562 = vmatpush1.msra.mxu0 0.0
        %563 = vmatprep.mubr.f32.mxu0 0.0
        %564 = vmatmul.mubr.f32.gmra.mrb[0].mxu0 %v266
        %v565 = vpop.f32.mrb[0].mxu0
        %v566 = vadd.f32 %v461, %v565
        %v567 = vpop.f32.mrb[0].mxu0
        %568 = vmatprep.mubr.f32.mxu0 0.0
        %569 = vmatmul.mubr.f32.gmra.mrb[0].mxu0 %v267
        %v570 = vpop.f32.mrb[0].mxu0
        %v571 = vadd.f32 %v466, %v570
        %v572 = vpop.f32.mrb[0].mxu0
        %573 = vmatprep.mubr.f32.mxu0 0.0
        %574 = vmatmul.mubr.f32.gmra.mrb[0].mxu0 %v268
        %v575 = vpop.f32.mrb[0].mxu0
        %v576 = vadd.f32 %v471, %v575
        %v577 = vpop.f32.mrb[0].mxu0
        %578 = vmatprep.mubr.f32.mxu0 0.0
        %579 = vmatmul.mubr.f32.gmra.mrb[0].mxu0 %v269
        %v580 = vpop.f32.mrb[0].mxu0
        %v581 = vadd.f32 %v476, %v580
        %v582 = vpop.f32.mrb[0].mxu0
        %583 = vmatprep.mubr.f32.mxu0 0.0
        %584 = vmatmul.mubr.f32.gmra.mrb[0].mxu0 %v270
        %v585 = vpop.f32.mrb[0].mxu0
        %v586 = vadd.f32 %v481, %v585
        %v587 = vpop.f32.mrb[0].mxu0
        %588 = vmatprep.mubr.f32.mxu0 0.0
        %589 = vmatmul.mubr.f32.gmra.mrb[0].mxu0 %v271
        %v590 = vpop.f32.mrb[0].mxu0
        %v591 = vadd.f32 %v486, %v590
        %v592 = vpop.f32.mrb[0].mxu0
        %593 = vmatprep.mubr.f32.mxu0 0.0
        %594 = vmatmul.mubr.f32.gmra.mrb[0].mxu0 %v272
        %v595 = vpop.f32.mrb[0].mxu0
        %v596 = vadd.f32 %v491, %v595
        %v597 = vpop.f32.mrb[0].mxu0
        %598 = vmatprep.mubr.f32.mxu0 0.0
        %599 = vmatmul.mubr.f32.gmra.mrb[0].mxu0 %v273
        %v600 = vpop.f32.mrb[0].mxu0
        %v601 = vadd.f32 %v496, %v600
        %v602 = vpop.f32.mrb[0].mxu0
        %603 = vdwg.mxu0
        %v604 = vmul.f32 %v354, %v566
        %v605 = vmul.f32 %v355, %v571
        %v606 = vmul.f32 %v356, %v576
        %v607 = vmul.f32 %v357, %v581
        %v608 = vmul.f32 %v358, %v586
        %v609 = vmul.f32 %v359, %v591
        %v610 = vmul.f32 %v360, %v596
        %v611 = vmul.f32 %v361, %v601
        %v612 = vld [vmem:[%s3] sm:$0x1]
        %v614 = vlaneseq
        %v615 = vshrl.u32 %v614, 7
        %v616 = vsub.s32 0, %v615
        %v617 = vrot.slane %v612, %v616
        %v619 = vadd.f32 %v604, %v617
        %v620 = vadd.f32 %v605, %v617
        %v621 = vadd.f32 %v606, %v617
        %v622 = vadd.f32 %v607, %v617
        %v623 = vadd.f32 %v608, %v617
        %v624 = vadd.f32 %v609, %v617
        %v625 = vadd.f32 %v610, %v617
        %v626 = vadd.f32 %v611, %v617
        %627 = vst [vmem:[%s193] sm:$0xff] %v619
        %628 = vst [vmem:[%s193 + $0x8] sm:$0xff] %v620
        %629 = vst [vmem:[%s193 + $0x10] sm:$0xff] %v621
        %630 = vst [vmem:[%s193 + $0x18] sm:$0xff] %v622
        %631 = vst [vmem:[%s193 + $0x20] sm:$0xff] %v623
        %632 = vst [vmem:[%s193 + $0x28] sm:$0xff] %v624
        %633 = vst [vmem:[%s193 + $0x30] sm:$0xff] %v625
        %634 = vst [vmem:[%s193 + $0x38] sm:$0xff] %v626
        %s635 = sand.u32 %s115, 1
        %s636 = scalar_lea.sflag [#allocation3], %s635
        %s637 = sand.u32 %s115, 1
        %s638 = smul.addr %s637, 64
        %s639 = scalar_lea.vmem [#allocation2], %s638
        // Predicated region
        $region37: #{patch_merging_forward.1} parent=35 // pred_check
          %p640 = pneg %p125
        $region38: #{patch_merging_forward.1} parent=35 // pred_check_branch
          %642 = sbr.rel (%p640) target = $region40
        $region39: #{patch_merging_forward.1} parent=35 // pred_region
          %s643 = smul.u32 8, %s18
          %s645 = ssub.s32 1024, 1024
          %646 = vsyncadd %s636, %s645
          %s647 = smul.addr %s643, 128
          %s648 = scalar_lea.hbm %s4, %s647
          %s649 = sshll.u32 %s639, 4
          %s650 = int_to_ptr.vmem [resolvable:$true] %s649
          %655 = dma.vmem_to_hbm [thread:$0]  %s650, 1024, %s648, %s636, 128, 128, 8
        $region40: #{patch_merging_forward.1} parent=35 // pred_fallthru
          _
      $region36: #{patch_merging_forward.1} parent=5 // pred_fallthru
        _
      %p656 = scmp.le.s32.totalorder 2, %s13
      // Predicated region
      $region41: #{patch_merging_forward.1} parent=5 // pred_check
        %p657 = pneg %p656
      $region42: #{patch_merging_forward.1} parent=5 // pred_check_branch
        %659 = sbr.rel (%p657) target = $region44
      $region43: #{patch_merging_forward.1} parent=5 // pred_region
        %s660 = ssub.s32 %s13, 2
        // Predicated region
        $region45: #{patch_merging_forward.1} parent=43 // pred_check
          %p661 = pneg %p131
        $region46: #{patch_merging_forward.1} parent=43 // pred_check_branch
          %663 = sbr.rel (%p661) target = $region48
        $region47: #{patch_merging_forward.1} parent=43 // pred_region
          %s664 = sand.u32 %s116, 1
          %s665 = scalar_lea.sflag [#allocation3], %s664
          %s666 = sand.u32 %s116, 1
          %s667 = smul.addr %s666, 64
          %s668 = scalar_lea.vmem [#allocation2], %s667
          %669 = dma.done %s665, 1024
        $region48: #{patch_merging_forward.1} parent=43 // pred_fallthru
          _
      $region44: #{patch_merging_forward.1} parent=5 // pred_fallthru
        _
    $region6: #{patch_merging_forward.1} parent=1 // loop_footer
      %s17 = sadd.s32 1, %s13
    $region7: #{patch_merging_forward.1} parent=1 // loop_footer_branch
      %12 = sbr.rel target = $region3
    $region8: #{patch_merging_forward.1} parent=1 // loop_exit
      _
    %670 = vsyncpa [#allocation3], 1
    %s671 = scalar_lea.sflag [#allocation3], 1
    %672 = vsyncpa %s671, 1

</llo_original>
